<compile_context>
chip_gen: v7x
topology: tpu7x:2x2x1
jax: 0.10.0
libtpu: 0.0.40
codegen_flags: <defaults>
</compile_context>

<pallas_src>
import functools

import jax
import jax.numpy as jnp
from jax import lax
from jax.experimental import pallas as pl
from jax.experimental.pallas import tpu as pltpu

LANE = 128
SUBLANE = 8


def _num_tensorcores_per_chip():
    """2 TensorCores/chip on v7x; 1 on v5e/v6e (and unknown/older)."""
    try:
        kind = jax.devices()[0].device_kind.lower()
    except Exception:
        return 1
    return 2 if ("v7" in kind or "tpu7" in kind) else 1


def _partial_sums_kernel(pred_ref, tgt_ref, out_ref, *,
                         rows, row_tile, chunk_rows, tiles_per_core, n_tiles,
                         exact_tail, full_cover, unroll):
    """Accumulates [SSE, sum(p), sum(t), sum(p*t)] as (8,128) vector partials."""
    c = pl.program_id(0)   # core (parallel) axis
    j = pl.program_id(1)   # sequential reduction axis
    tile = c * tiles_per_core + j
    num_chunks = row_tile // chunk_rows

    # Zero this core's resident accumulator block on its first step (runs even
    # for cores whose every tile is a skipped duplicate, so the output is
    # always defined).
    @pl.when(j == 0)
    def _():
        out_ref[...] = jnp.zeros_like(out_ref)

    def vreduce(x):
        # (chunk_rows, 128) -> (8, 128): pure vreg-wise VALU adds, no XLU work.
        return jnp.sum(x.reshape(-1, SUBLANE, LANE), axis=0)

    def accumulate(masked):
        def chunk_step(i, carry):
            sse, sp, st, stp = carry
            r0 = pl.multiple_of(i * chunk_rows, chunk_rows)
            p = pred_ref[pl.ds(r0, chunk_rows), :].astype(jnp.float32)
            t = tgt_ref[pl.ds(r0, chunk_rows), :].astype(jnp.float32)
            if masked:
                row = (tile * row_tile + r0
                       + lax.broadcasted_iota(jnp.int32, (chunk_rows, LANE), 0))
                valid = row < rows
                # Select (not multiply) so stale/NaN data in the overhang
                # region of the last block cannot propagate into the sums.
                p = jnp.where(valid, p, 0.0)
                t = jnp.where(valid, t, 0.0)
            diff = p - t
            # TODO(synk): for bf16 inputs on v6e/v7x, diff and p*t could stay in
            # bf16 on the VPU and widen only at the reduce; kept in f32 here for
            # exactness with the reference.
            return (sse + vreduce(diff * diff),
                    sp + vreduce(p),
                    st + vreduce(t),
                    stp + vreduce(p * t))

        zeros = jnp.zeros((SUBLANE, LANE), jnp.float32)
        sse, sp, st, stp = lax.fori_loop(
            0, num_chunks, chunk_step, (zeros, zeros, zeros, zeros),
            unroll=unroll)
        out_ref[0, 0, :, :] += sse   # sum of squared errors
        out_ref[0, 1, :, :] += sp    # sum(pred)
        out_ref[0, 2, :, :] += st    # sum(target)
        out_ref[0, 3, :, :] += stp   # sum(pred*target) = TP

    if exact_tail and full_cover:
        # Every (core, j) grid point is a distinct, fully valid tile: no
        # gating, no masking — pure HBM-streaming hot path.
        accumulate(masked=False)
    else:
        last_full = n_tiles if exact_tail else n_tiles - 1

        @pl.when(tile < last_full)
        def _():
            accumulate(masked=False)

        if not exact_tail:
            @pl.when(tile == n_tiles - 1)
            def _():
                accumulate(masked=True)
        # Tiles with tile >= n_tiles are duplicated (index-clamped) grid points
        # from over-coverage; they hit neither branch and contribute nothing.


def combined_loss(pred, target, *, mse_scale=50.0, f1_weight=0.5,
                  epsilon=1e-7, row_tile=4096):
    """Pallas implementation of CombinedLoss.forward (returns a scalar)."""
    assert pred.shape == target.shape
    n = pred.size  # true element count (MSE mean divisor)

    # Keep native dtypes (halves HBM traffic for bf16); kernel casts per chunk.
    pf = pred.reshape(-1)
    tf = target.reshape(-1)

    # Dtype-native sublane multiple (8 f32 / 16 bf16 / 32 int8-fp8) so packed
    # dtypes keep native tiling; take the max over the two inputs.
    def _sub(dt):
        return SUBLANE * max(1, 4 // dt.itemsize)

    sub = max(_sub(pred.dtype), _sub(target.dtype))
    chunk_elems = sub * LANE

    # Pad (zeros) only up to the next native-tile boundary so the flat buffer
    # reshapes to a lane-dense (rows, 128) slab. Zero padding is exact for all
    # four partial sums; when n is already aligned this is a free reshape.
    n_pad = pl.cdiv(n, chunk_elems) * chunk_elems
    if n_pad != n:
        # TODO(synk): for very large non-aligned inputs this pad is an extra
        # HBM copy; could be replaced with a per-element tail mask in-kernel.
        pf = jnp.pad(pf, (0, n_pad - n))
        tf = jnp.pad(tf, (0, n_pad - n))
    rows = n_pad // LANE
    pf = pf.reshape(rows, LANE)
    tf = tf.reshape(rows, LANE)

    # Effective row tile: multiple of the native sublane tile, at most `rows`.
    rt = max(sub, (min(row_tile, rows) // sub) * sub)
    # Inner chunk size: largest of 32/16/8 dividing rt (bounds live vregs).
    chunk_rows = next(cr for cr in (32, 16, 8) if rt % cr == 0)
    num_chunks = rt // chunk_rows
    unroll = max(1, min(4, num_chunks))

    num_cores = _num_tensorcores_per_chip()
    n_tiles = pl.cdiv(rows, rt)
    tiles_per_core = pl.cdiv(n_tiles, num_cores)
    exact_tail = (n_tiles * rt == rows)
    full_cover = (num_cores * tiles_per_core == n_tiles)

    def in_map(c, j):
        # Clamp so the DMA block index is always in range; over-covered
        # (duplicate) tiles are skipped in-kernel.
        return (jnp.minimum(c * tiles_per_core + j, n_tiles - 1), 0)

    kernel = functools.partial(
        _partial_sums_kernel,
        rows=rows, row_tile=rt, chunk_rows=chunk_rows,
        tiles_per_core=tiles_per_core, n_tiles=n_tiles,
        exact_tail=exact_tail, full_cover=full_cover, unroll=unroll)

    if num_cores == 2:
        # v7x: explicitly shard the leading axis across the two TensorCores.
        dim_sem = (pltpu.CORE_PARALLEL, pltpu.ARBITRARY)
    else:
        dim_sem = ("parallel", "arbitrary")

    # NOTE: double-buffered working set = 2 inputs * 2 bufs * rt*128*itemsize
    # (~8 MiB at rt=4096 f32) — under the scoped-VMEM default on all
    # generations, so no vmem_limit_bytes override is needed. pl.Buffered(3)
    # on the input specs is a possible further tweak if a trace shows DMA
    # bubbles; left at the default depth here.
    partials = pl.pallas_call(
        kernel,
        out_shape=jax.ShapeDtypeStruct((num_cores, 4, SUBLANE, LANE),
                                       jnp.float32),
        grid_spec=pltpu.PrefetchScalarGridSpec(
            num_scalar_prefetch=0,
            grid=(num_cores, tiles_per_core),
            in_specs=[
                pl.BlockSpec((rt, LANE), in_map),
                pl.BlockSpec((rt, LANE), in_map),
            ],
            out_specs=pl.BlockSpec((1, 4, SUBLANE, LANE),
                                   lambda c, j: (c, 0, 0, 0)),
        ),
        compiler_params=pltpu.CompilerParams(dimension_semantics=dim_sem),
    )(pf, tf)

    # Tiny plain-JAX epilogue (one small fused XLA op): cross-lane reduction of
    # the per-core (4,8,128) partials plus a handful of scalar ops.
    sums = jnp.sum(partials, axis=(0, 2, 3))          # (4,) f32
    sse, sum_p, sum_t, tp = sums[0], sums[1], sums[2], sums[3]

    mse = (sse / jnp.float32(n)) * jnp.float32(mse_scale)

    fp = sum_p - tp                                    # sum(p * (1 - t))
    fn = sum_t - tp                                    # sum((1 - p) * t)
    eps = jnp.float32(epsilon)
    precision = tp / (tp + fp + eps)
    recall = tp / (tp + fn + eps)
    f1 = 2.0 * precision * recall / (precision + recall + eps)
    f1_loss = 1.0 - f1

    return jnp.float32(f1_weight) * f1_loss + jnp.float32(1.0 - f1_weight) * mse


def _reference(pred, target, mse_scale=50.0, f1_weight=0.5, epsilon=1e-7):
    p = pred.astype(jnp.float32)
    t = target.astype(jnp.float32)
    mse = jnp.mean((p - t) ** 2) * mse_scale
    tp = jnp.sum(p * t)
    fp = jnp.sum(p * (1.0 - t))
    fn = jnp.sum((1.0 - p) * t)
    precision = tp / (tp + fp + epsilon)
    recall = tp / (tp + fn + epsilon)
    f1 = 2.0 * precision * recall / (precision + recall + epsilon)
    return f1_weight * (1.0 - f1) + (1.0 - f1_weight) * mse


if __name__ == "__main__":
    key = jax.random.PRNGKey(0)
    kp, kt = jax.random.split(key)

    # Small NCHW segmentation-style prediction / binary target.
    pred = jax.random.uniform(kp, (2, 4, 16, 16), dtype=jnp.float32)   # probabilities
    target = (jax.random.uniform(kt, (2, 4, 16, 16)) > 0.5).astype(jnp.float32)

    # TODO(synk): the PyTorch print-under-grad side effect is intentionally omitted.
    loss = jax.jit(combined_loss)(pred, target)
    loss = jax.block_until_ready(loss)

    ref = _reference(pred, target)
    assert jnp.allclose(loss, ref, rtol=1e-5, atol=1e-5), (loss, ref)
    print("KERNEL_OK")
</pallas_src>

<mosaic_0001>
module attributes {stable_mosaic.version = 11 : i64} {
  func.func @_partial_sums_kernel(%arg0: i32, %arg1: i32, %arg2: memref<16x128xf32, #tpu.memory_space<vmem>>, %arg3: memref<16x128xf32, #tpu.memory_space<vmem>>, %arg4: memref<1x4x8x128xf32, #tpu.memory_space<vmem>>) attributes {dimension_semantics = [#tpu.dimension_semantics<parallel>, #tpu.dimension_semantics<arbitrary>], iteration_bounds = array<i64: 1, 1>, scalar_prefetch = 0 : i64, scratch_operands = 0 : i64, tpu.core_type = #tpu.core_type<tc>, window_params = [{transform_indices = @transform_0, window_bounds = array<i64: 16, 128>}, {transform_indices = @transform_1, window_bounds = array<i64: 16, 128>}, {transform_indices = @transform_2, window_bounds = array<i64: 1, 4, 8, 128>}]} {
    %c0_i32 = arith.constant 0 : i32
    %0 = arith.cmpi eq, %arg1, %c0_i32 : i32
    %1 = arith.extui %0 : i1 to i32
    %c0_i32_0 = arith.constant 0 : i32
    %2 = arith.cmpi ne, %1, %c0_i32_0 : i32
    scf.if %2 {
      %cst_36 = arith.constant 0.000000e+00 : f32
      %49 = vector.broadcast %cst_36 : f32 to vector<1x4x8x128xf32>
      %c0_37 = arith.constant 0 : index
      %c0_38 = arith.constant 0 : index
      %c0_39 = arith.constant 0 : index
      %c0_40 = arith.constant 0 : index
      %50 = vector.load %arg4[%c0_37, %c0_38, %c0_39, %c0_40] : memref<1x4x8x128xf32, #tpu.memory_space<vmem>>, vector<1x4x8x128xf32>
      tpu.vector_store %arg4[%c0_37, %c0_38, %c0_39, %c0_40], %49 {strides = array<i32>} : memref<1x4x8x128xf32, #tpu.memory_space<vmem>>, vector<1x4x8x128xf32>,
    } else {
    }
    %cst = arith.constant 0.000000e+00 : f32
    %3 = vector.broadcast %cst : f32 to vector<8x128xf32>
    %c0_i32_1 = arith.constant 0 : i32
    %c16_i32 = arith.constant 16 : i32
    %4 = arith.muli %c0_i32_1, %c16_i32 : i32
    %5 = tpu.assume_multiple %4, 16 : i32
    %6 = arith.index_cast %5 : i32 to index
    %c0 = arith.constant 0 : index
    %7 = vector.load %arg2[%6, %c0] : memref<16x128xf32, #tpu.memory_space<vmem>>, vector<16x128xf32>
    %8 = arith.index_cast %5 : i32 to index
    %c0_2 = arith.constant 0 : index
    %9 = vector.load %arg3[%8, %c0_2] : memref<16x128xf32, #tpu.memory_space<vmem>>, vector<16x128xf32>
    %10 = arith.subf %7, %9 : vector<16x128xf32>
    %11 = arith.mulf %10, %10 : vector<16x128xf32>
    %12 = vector.shape_cast %11 : vector<16x128xf32> to vector<2x8x128xf32>
    %cst_3 = arith.constant dense<0.000000e+00> : vector<8x128xf32>
    %13 = vector.multi_reduction <add>, %12, %cst_3 [0] : vector<2x8x128xf32> to vector<8x128xf32>
    %14 = arith.addf %3, %13 : vector<8x128xf32>
    %15 = vector.shape_cast %7 : vector<16x128xf32> to vector<2x8x128xf32>
    %cst_4 = arith.constant dense<0.000000e+00> : vector<8x128xf32>
    %16 = vector.multi_reduction <add>, %15, %cst_4 [0] : vector<2x8x128xf32> to vector<8x128xf32>
    %17 = arith.addf %3, %16 : vector<8x128xf32>
    %18 = vector.shape_cast %9 : vector<16x128xf32> to vector<2x8x128xf32>
    %cst_5 = arith.constant dense<0.000000e+00> : vector<8x128xf32>
    %19 = vector.multi_reduction <add>, %18, %cst_5 [0] : vector<2x8x128xf32> to vector<8x128xf32>
    %20 = arith.addf %3, %19 : vector<8x128xf32>
    %21 = arith.mulf %7, %9 : vector<16x128xf32>
    %22 = vector.shape_cast %21 : vector<16x128xf32> to vector<2x8x128xf32>
    %cst_6 = arith.constant dense<0.000000e+00> : vector<8x128xf32>
    %23 = vector.multi_reduction <add>, %22, %cst_6 [0] : vector<2x8x128xf32> to vector<8x128xf32>
    %24 = arith.addf %3, %23 : vector<8x128xf32>
    %c1_i32 = arith.constant 1 : i32
    %c0_7 = arith.constant 0 : index
    %c0_8 = arith.constant 0 : index
    %c0_9 = arith.constant 0 : index
    %c0_10 = arith.constant 0 : index
    %25 = vector.load %arg4[%c0_7, %c0_8, %c0_9, %c0_10] : memref<1x4x8x128xf32, #tpu.memory_space<vmem>>, vector<1x1x8x128xf32>
    %26 = vector.shape_cast %25 : vector<1x1x8x128xf32> to vector<8x128xf32>
    %27 = arith.addf %26, %14 : vector<8x128xf32>
    %c0_11 = arith.constant 0 : index
    %c0_12 = arith.constant 0 : index
    %c0_13 = arith.constant 0 : index
    %c0_14 = arith.constant 0 : index
    %28 = vector.load %arg4[%c0_11, %c0_12, %c0_13, %c0_14] : memref<1x4x8x128xf32, #tpu.memory_space<vmem>>, vector<1x1x8x128xf32>
    %29 = vector.shape_cast %28 : vector<1x1x8x128xf32> to vector<8x128xf32>
    %30 = vector.shape_cast %27 : vector<8x128xf32> to vector<1x1x8x128xf32>
    tpu.vector_store %arg4[%c0_11, %c0_12, %c0_13, %c0_14], %30 {strides = array<i32>} : memref<1x4x8x128xf32, #tpu.memory_space<vmem>>, vector<1x1x8x128xf32>,
    %c0_15 = arith.constant 0 : index
    %c1 = arith.constant 1 : index
    %c0_16 = arith.constant 0 : index
    %c0_17 = arith.constant 0 : index
    %31 = vector.load %arg4[%c0_15, %c1, %c0_16, %c0_17] : memref<1x4x8x128xf32, #tpu.memory_space<vmem>>, vector<1x1x8x128xf32>
    %32 = vector.shape_cast %31 : vector<1x1x8x128xf32> to vector<8x128xf32>
    %33 = arith.addf %32, %17 : vector<8x128xf32>
    %c0_18 = arith.constant 0 : index
    %c1_19 = arith.constant 1 : index
    %c0_20 = arith.constant 0 : index
    %c0_21 = arith.constant 0 : index
    %34 = vector.load %arg4[%c0_18, %c1_19, %c0_20, %c0_21] : memref<1x4x8x128xf32, #tpu.memory_space<vmem>>, vector<1x1x8x128xf32>
    %35 = vector.shape_cast %34 : vector<1x1x8x128xf32> to vector<8x128xf32>
    %36 = vector.shape_cast %33 : vector<8x128xf32> to vector<1x1x8x128xf32>
    tpu.vector_store %arg4[%c0_18, %c1_19, %c0_20, %c0_21], %36 {strides = array<i32>} : memref<1x4x8x128xf32, #tpu.memory_space<vmem>>, vector<1x1x8x128xf32>,
    %c0_22 = arith.constant 0 : index
    %c2 = arith.constant 2 : index
    %c0_23 = arith.constant 0 : index
    %c0_24 = arith.constant 0 : index
    %37 = vector.load %arg4[%c0_22, %c2, %c0_23, %c0_24] : memref<1x4x8x128xf32, #tpu.memory_space<vmem>>, vector<1x1x8x128xf32>
    %38 = vector.shape_cast %37 : vector<1x1x8x128xf32> to vector<8x128xf32>
    %39 = arith.addf %38, %20 : vector<8x128xf32>
    %c0_25 = arith.constant 0 : index
    %c2_26 = arith.constant 2 : index
    %c0_27 = arith.constant 0 : index
    %c0_28 = arith.constant 0 : index
    %40 = vector.load %arg4[%c0_25, %c2_26, %c0_27, %c0_28] : memref<1x4x8x128xf32, #tpu.memory_space<vmem>>, vector<1x1x8x128xf32>
    %41 = vector.shape_cast %40 : vector<1x1x8x128xf32> to vector<8x128xf32>
    %42 = vector.shape_cast %39 : vector<8x128xf32> to vector<1x1x8x128xf32>
    tpu.vector_store %arg4[%c0_25, %c2_26, %c0_27, %c0_28], %42 {strides = array<i32>} : memref<1x4x8x128xf32, #tpu.memory_space<vmem>>, vector<1x1x8x128xf32>,
    %c0_29 = arith.constant 0 : index
    %c3 = arith.constant 3 : index
    %c0_30 = arith.constant 0 : index
    %c0_31 = arith.constant 0 : index
    %43 = vector.load %arg4[%c0_29, %c3, %c0_30, %c0_31] : memref<1x4x8x128xf32, #tpu.memory_space<vmem>>, vector<1x1x8x128xf32>
    %44 = vector.shape_cast %43 : vector<1x1x8x128xf32> to vector<8x128xf32>
    %45 = arith.addf %44, %24 : vector<8x128xf32>
    %c0_32 = arith.constant 0 : index
    %c3_33 = arith.constant 3 : index
    %c0_34 = arith.constant 0 : index
    %c0_35 = arith.constant 0 : index
    %46 = vector.load %arg4[%c0_32, %c3_33, %c0_34, %c0_35] : memref<1x4x8x128xf32, #tpu.memory_space<vmem>>, vector<1x1x8x128xf32>
    %47 = vector.shape_cast %46 : vector<1x1x8x128xf32> to vector<8x128xf32>
    %48 = vector.shape_cast %45 : vector<8x128xf32> to vector<1x1x8x128xf32>
    tpu.vector_store %arg4[%c0_32, %c3_33, %c0_34, %c0_35], %48 {strides = array<i32>} : memref<1x4x8x128xf32, #tpu.memory_space<vmem>>, vector<1x1x8x128xf32>,
    return
  }
  func.func @transform_0(%arg0: i32, %arg1: i32) -> (i32, i32) {
    %c1_i32 = arith.constant 1 : i32
    %0 = arith.muli %arg0, %c1_i32 : i32
    %1 = arith.addi %0, %arg1 : i32
    %c0_i32 = arith.constant 0 : i32
    %2 = arith.minsi %1, %c0_i32 : i32
    %c0_i32_0 = arith.constant 0 : i32
    %c0_i32_1 = arith.constant 0 : i32
    return %2, %c0_i32_0 : i32, i32
  }
  func.func @transform_1(%arg0: i32, %arg1: i32) -> (i32, i32) {
    %c1_i32 = arith.constant 1 : i32
    %0 = arith.muli %arg0, %c1_i32 : i32
    %1 = arith.addi %0, %arg1 : i32
    %c0_i32 = arith.constant 0 : i32
    %2 = arith.minsi %1, %c0_i32 : i32
    %c0_i32_0 = arith.constant 0 : i32
    %c0_i32_1 = arith.constant 0 : i32
    return %2, %c0_i32_0 : i32, i32
  }
  func.func @transform_2(%arg0: i32, %arg1: i32) -> (i32, i32, i32, i32) {
    %c0_i32 = arith.constant 0 : i32
    %c0_i32_0 = arith.constant 0 : i32
    %c0_i32_1 = arith.constant 0 : i32
    %c0_i32_2 = arith.constant 0 : i32
    return %arg0, %c0_i32, %c0_i32_0, %c0_i32_1 : i32, i32, i32, i32
  }
}

</mosaic_0001>

<llo_original>
// kernel: combined_loss.1
$region0: #{combined_loss.1}
  #allocation0 [shape = 'u32[]', space=smem, size = 0x4, offset = 0x4, fixed_abs, tag = 'smem constant byte address 0x4 - core index']
  #allocation1 [shape = 'u32[144,128]{1,0:T(1,128)}', space=vmem, size = 0x12000, scoped, tag = 'internal scratch']
  %s0 = inlined_call_operand.vmem [shape: f32[16,128], index: 0, kind: input, shape index: {}]
  %s1 = inlined_call_operand.vmem [shape: f32[16,128], index: 1, kind: input, shape index: {}]
  %s2 = inlined_call_operand.vmem [shape: f32[1,4,8,128], index: 2, kind: output, shape index: {}]
  %s3 = sld [smem:[#allocation0]]
  $region22: #{combined_loss.1} parent=0
    _
  %s5 = ssub.s32 1, %s3
  %s6 = scalar_select 0, %s5, %s3
  // Predicated region
  $region2: #{combined_loss.1} parent=0 // pred_check
    _
  $region3: #{combined_loss.1} parent=0 // pred_check_branch
    %8 = sbr.rel (0) target = $region5
  $region4: #{combined_loss.1} parent=0 // pred_region
    %s9 = sadd.s32 0, 0
    %p10 = scmp.lt.s32.totalorder %s9, 0
    %s11 = scalar_select %p10, %s9, 0
    %s12 = smul.u32 2, %s11
    %p13 = scmp.lt.s32.totalorder %s12, 1
    %s14 = scalar_select %p13, %s12, 1
    %s15 = smul.addr %s14, 8
    %s16 = scalar_lea.vmem %s0, %s15
    %s17 = sadd.s32 0, 0
    %p18 = scmp.lt.s32.totalorder %s17, 0
    %s19 = scalar_select %p18, %s17, 0
    %s20 = smul.u32 2, %s19
  $region5: #{combined_loss.1} parent=0 // pred_fallthru
    _
  // Predicated region
  $region6: #{combined_loss.1} parent=0 // pred_check
    _
  $region7: #{combined_loss.1} parent=0 // pred_check_branch
    %22 = sbr.rel (0) target = $region9
  $region8: #{combined_loss.1} parent=0 // pred_region
    %s23 = sadd.s32 0, 0
    %p24 = scmp.lt.s32.totalorder %s23, 0
    %s25 = scalar_select %p24, %s23, 0
    %s26 = smul.u32 2, %s25
    %p27 = scmp.lt.s32.totalorder %s26, 1
    %s28 = scalar_select %p27, %s26, 1
    %s29 = smul.addr %s28, 8
    %s30 = scalar_lea.vmem %s1, %s29
    %s31 = sadd.s32 0, 0
    %p32 = scmp.lt.s32.totalorder %s31, 0
    %s33 = scalar_select %p32, %s31, 0
    %s34 = smul.u32 2, %s33
  $region9: #{combined_loss.1} parent=0 // pred_fallthru
    _
  %s35 = sadd.s32 0, 0
  %p36 = scmp.lt.s32.totalorder %s35, 0
  %s37 = scalar_select %p36, %s35, 0
  %s38 = smul.u32 2, %s37
  %p39 = scmp.lt.s32.totalorder %s38, 1
  %s40 = scalar_select %p39, %s38, 1
  %s41 = smul.addr %s40, 8
  %s42 = scalar_lea.vmem %s0, %s41
  %s43 = sadd.s32 0, 0
  %p44 = scmp.lt.s32.totalorder %s43, 0
  %s45 = scalar_select %p44, %s43, 0
  %s46 = smul.u32 2, %s45
  %p47 = scmp.lt.s32.totalorder %s46, 1
  %s48 = scalar_select %p47, %s46, 1
  %s49 = smul.addr %s48, 8
  %s50 = scalar_lea.vmem %s1, %s49
  %s51 = sadd.s32 0, 0
  %p52 = scmp.lt.s32.totalorder %s51, 0
  %s53 = scalar_select %p52, %s51, 0
  %s54 = smul.u32 2, %s53
  %p55 = scmp.lt.s32.totalorder %s54, 1
  %s56 = scalar_select %p55, %s54, 1
  %s57 = smul.addr %s56, 8
  %s58 = scalar_lea.vmem %s0, %s57
  %s59 = sadd.s32 0, 0
  %p60 = scmp.lt.s32.totalorder %s59, 0
  %s61 = scalar_select %p60, %s59, 0
  %s62 = smul.u32 2, %s61
  %s63 = sadd.s32 0, 0
  %p64 = scmp.lt.s32.totalorder %s63, 0
  %s65 = scalar_select %p64, %s63, 0
  %s66 = smul.u32 2, %s65
  %p67 = scmp.lt.s32.totalorder %s66, 1
  %s68 = scalar_select %p67, %s66, 1
  %s69 = smul.addr %s68, 8
  %s70 = scalar_lea.vmem %s1, %s69
  %s71 = sadd.s32 0, 0
  %p72 = scmp.lt.s32.totalorder %s71, 0
  %s73 = scalar_select %p72, %s71, 0
  %s74 = smul.u32 2, %s73
  %p75 = scmp.eq.s32.totalorder 0, 0
  // Predicated region
  $region10: #{combined_loss.1} parent=0 // pred_check
    %p76 = pneg %p75
  $region11: #{combined_loss.1} parent=0 // pred_check_branch
    %78 = sbr.rel (%p76) target = $region13
  $region12: #{combined_loss.1} parent=0 // pred_region
    %79 = vst [vmem:[%s2] sm:$0xff] 0.0
    %80 = vst [vmem:[%s2 + $0x8] sm:$0xff] 0.0
    %81 = vst [vmem:[%s2 + $0x10] sm:$0xff] 0.0
    %82 = vst [vmem:[%s2 + $0x18] sm:$0xff] 0.0
  $region13: #{combined_loss.1} parent=0 // pred_fallthru
    _
  %v83 = vld [vmem:[%s58] sm:$0xff]
  %v84 = vld [vmem:[%s58 + $0x8] sm:$0xff]
  %v85 = vld [vmem:[%s70] sm:$0xff]
  %v86 = vld [vmem:[%s70 + $0x8] sm:$0xff]
  %v87 = vsub.f32 %v83, %v85
  %v88 = vsub.f32 %v84, %v86
  %v89 = vmul.f32 %v87, %v87
  %v90 = vmul.f32 %v88, %v88
  %v91 = vadd.f32 %v89, %v90
  %v92 = vadd.f32 %v91, 0.0
  %v93 = vadd.f32 %v83, %v84
  %v94 = vadd.f32 %v93, 0.0
  %v95 = vadd.f32 %v85, %v86
  %v96 = vadd.f32 %v95, 0.0
  %v97 = vmul.f32 %v83, %v85
  %v98 = vmul.f32 %v84, %v86
  %v99 = vadd.f32 %v97, %v98
  %v100 = vadd.f32 %v99, 0.0
  %v101 = vld [vmem:[%s2] sm:$0xff]
  %v102 = vadd.f32 %v101, %v92
  %103 = vst [vmem:[%s2] sm:$0xff] %v102
  %s104 = scalar_lea.vmem %s2, 8
  %v105 = vld [vmem:[%s104] sm:$0xff]
  %v106 = vadd.f32 %v105, %v94
  %107 = vst [vmem:[%s104] sm:$0xff] %v106
  %s108 = scalar_lea.vmem %s2, 16
  %v109 = vld [vmem:[%s108] sm:$0xff]
  %v110 = vadd.f32 %v109, %v96
  %111 = vst [vmem:[%s108] sm:$0xff] %v110
  %s112 = scalar_lea.vmem %s2, 24
  %v113 = vld [vmem:[%s112] sm:$0xff]
  %v114 = vadd.f32 %v113, %v100
  %115 = vst [vmem:[%s112] sm:$0xff] %v114
  // Predicated region
  $region14: #{combined_loss.1} parent=0 // pred_check
    _
  $region15: #{combined_loss.1} parent=0 // pred_check_branch
    %117 = sbr.rel (0) target = $region17
  $region16: #{combined_loss.1} parent=0 // pred_region
    _
  $region17: #{combined_loss.1} parent=0 // pred_fallthru
    _
  // Predicated region
  $region18: #{combined_loss.1} parent=0 // pred_check
    _
  $region19: #{combined_loss.1} parent=0 // pred_check_branch
    %119 = sbr.rel (0) target = $region21
  $region20: #{combined_loss.1} parent=0 // pred_region
    _
  $region21: #{combined_loss.1} parent=0 // pred_fallthru
    _

</llo_original>
